<compile_context>
chip_gen: v6e
topology: v6e:2x2x1
jax: 0.10.0
libtpu: 0.0.40
codegen_flags: <defaults>
</compile_context>

<pallas_src>
import functools

import jax
import jax.numpy as jnp
from jax import lax
from jax.experimental import pallas as pl
from jax.experimental.pallas import tpu as pltpu

HID1, HID2, HID3, HOUT = 512, 256, 128, 128  # HOUT = padded fused-head width
BIAS_LANES = HID1 + HID2 + HID3 + HOUT       # 1024


def actor_critic_kernel(x_ref, w1_ref, w2_ref, w3_ref, wh_ref, bias_ref,
                        out_ref, *, action_size):
    # Packed biases: [1, 1024] f32 (all slice boundaries are 128-aligned).
    b1 = bias_ref[:, 0:HID1]
    b2 = bias_ref[:, HID1:HID1 + HID2]
    b3 = bias_ref[:, HID1 + HID2:HID1 + HID2 + HID3]
    bh = bias_ref[:, HID1 + HID2 + HID3:BIAS_LANES]

    # bf16 x bf16 -> f32 accumulation on the MXU; biases/ReLU in f32.
    x = x_ref[...].astype(jnp.bfloat16)                       # [TILE_B, S]
    h = jnp.dot(x, w1_ref[...], preferred_element_type=jnp.float32) + b1
    h = jnp.maximum(h, 0.0)

    h = jnp.dot(h.astype(jnp.bfloat16), w2_ref[...],
                preferred_element_type=jnp.float32) + b2
    h = jnp.maximum(h, 0.0)

    h = jnp.dot(h.astype(jnp.bfloat16), w3_ref[...],
                preferred_element_type=jnp.float32) + b3
    h = jnp.maximum(h, 0.0)

    # Fused actor+critic head: lanes [0, A) = actor logits, lane A = value,
    # lanes > A are zero padding (zero weights / zero bias).
    head = jnp.dot(h.astype(jnp.bfloat16), wh_ref[...],
                   preferred_element_type=jnp.float32) + bh   # [TILE_B, 128]

    lane = lax.broadcasted_iota(jnp.int32, (1, HOUT), 1)      # [1, 128]
    actor_lane = lane < action_size

    # Stable softmax over actor lanes only (padded lanes -> -inf -> exp 0).
    masked = jnp.where(actor_lane, head, -jnp.inf)
    m = jnp.max(masked, axis=-1, keepdims=True)
    e = jnp.exp(masked - m)
    denom = jnp.sum(e, axis=-1, keepdims=True)
    probs = e * pl.reciprocal(denom, approx=True)             # EUP vrcp

    # Lane-dense store: probs in lanes < A, raw critic value in lane A,
    # zeros elsewhere (probs is exactly 0 on padded lanes).
    out = jnp.where(lane == action_size, head, probs)
    out_ref[...] = out.astype(out_ref.dtype)


def pack_params(params, action_size):
    """Cast matmul weights to bf16, fuse actor/critic heads, pack all biases."""
    A = action_size
    assert A + 1 <= HOUT, "fused head assumes action_size + 1 <= 128"

    w1 = params["w1"].astype(jnp.bfloat16)
    w2 = params["w2"].astype(jnp.bfloat16)
    w3 = params["w3"].astype(jnp.bfloat16)

    wh = jnp.zeros((HID3, HOUT), jnp.float32)
    wh = wh.at[:, :A].set(params["wa"])
    wh = wh.at[:, A].set(params["wc"][:, 0])
    wh = wh.astype(jnp.bfloat16)

    bh = jnp.zeros((1, HOUT), jnp.float32)
    bh = bh.at[:, :A].set(params["ba"])
    bh = bh.at[:, A].set(params["bc"][:, 0])
    biases = jnp.concatenate(
        [params["b1"], params["b2"], params["b3"], bh], axis=-1)  # [1,1024] f32

    return w1, w2, w3, wh, biases


def _round_up(v, m):
    return (v + m - 1) // m * m


def _cdiv(a, b):
    return -(-a // b)


def actor_critic_forward(x, params, *, action_size, tile_b=1024):
    """x: [B, state_size] float32. Returns (action_probs [B, A], value [B, 1])."""
    B, S = x.shape
    A = action_size

    w1, w2, w3, wh, biases = pack_params(params, A)

    # Tile selection: bound padding waste to one sublane granule per tile and,
    # for big batches, guarantee >= 2 grid steps so the "parallel" batch axis
    # can shard across both TensorCores on v7x (weights are tiny; duplicating
    # them per core is free).
    n_tiles = max(1, _cdiv(B, tile_b))
    if n_tiles == 1 and B >= 256:
        n_tiles = 2
    TILE_B = _round_up(_cdiv(B, n_tiles), 8)
    B_pad = n_tiles * TILE_B
    if B_pad != B:
        x = jnp.pad(x, ((0, B_pad - B), (0, 0)))
    grid = (n_tiles,)

    flops = 2 * B_pad * (S * HID1 + HID1 * HID2 + HID2 * HID3 + HID3 * HOUT)
    bytes_accessed = (
        2 * (w1.size + w2.size + w3.size + wh.size)   # bf16 weights
        + 4 * biases.size + 4 * B_pad * S + 4 * B_pad * HOUT)
    cost = pl.CostEstimate(flops=flops,
                           transcendentals=B_pad * HOUT,
                           bytes_accessed=bytes_accessed)

    out = pl.pallas_call(
        functools.partial(actor_critic_kernel, action_size=A),
        out_shape=jax.ShapeDtypeStruct((B_pad, HOUT), jnp.float32),
        grid=grid,
        in_specs=[
            pl.BlockSpec((TILE_B, S), lambda i: (i, 0)),        # x tiles over batch
            pl.BlockSpec((S, HID1), lambda i: (0, 0)),          # weights resident
            pl.BlockSpec((HID1, HID2), lambda i: (0, 0)),
            pl.BlockSpec((HID2, HID3), lambda i: (0, 0)),
            pl.BlockSpec((HID3, HOUT), lambda i: (0, 0)),
            pl.BlockSpec((1, BIAS_LANES), lambda i: (0, 0)),    # packed biases
        ],
        out_specs=pl.BlockSpec((TILE_B, HOUT), lambda i: (i, 0)),
        compiler_params=pltpu.CompilerParams(
            dimension_semantics=("parallel",)),
        cost_estimate=cost,
    )(x, w1, w2, w3, wh, biases)

    # Single contiguous slice, then split into probs / value.
    head = out[:B, :A + 1]
    probs = head[:, :A]
    value = head[:, A:A + 1]
    return probs, value


def init_params(key, state_size, action_size):
    """PyTorch nn.Linear default init (U[-1/sqrt(fan_in), 1/sqrt(fan_in)]).
    Weights stored as [in, out] (pre-transposed for y = x @ W + b)."""
    def linear(k, fan_in, fan_out):
        kw, kb = jax.random.split(k)
        bound = 1.0 / jnp.sqrt(fan_in)
        w = jax.random.uniform(kw, (fan_in, fan_out), jnp.float32, -bound, bound)
        b = jax.random.uniform(kb, (1, fan_out), jnp.float32, -bound, bound)
        return w, b

    k1, k2, k3, ka, kc = jax.random.split(key, 5)
    w1, b1 = linear(k1, state_size, HID1)
    w2, b2 = linear(k2, HID1, HID2)
    w3, b3 = linear(k3, HID2, HID3)
    wa, ba = linear(ka, HID3, action_size)
    wc, bc = linear(kc, HID3, 1)
    return dict(w1=w1, b1=b1, w2=w2, b2=b2, w3=w3, b3=b3,
                wa=wa, ba=ba, wc=wc, bc=bc)


def reference_forward(x, params):
    """Plain-JAX reference mimicking the kernel's bf16-MXU path
    (bf16 operands, f32 accumulation, f32 bias/ReLU/softmax)."""
    def mm(a, w):
        return jnp.dot(a.astype(jnp.bfloat16), w.astype(jnp.bfloat16),
                       preferred_element_type=jnp.float32)
    h = jnp.maximum(mm(x, params["w1"]) + params["b1"], 0.0)
    h = jnp.maximum(mm(h, params["w2"]) + params["b2"], 0.0)
    h = jnp.maximum(mm(h, params["w3"]) + params["b3"], 0.0)
    logits = mm(h, params["wa"]) + params["ba"]
    value = mm(h, params["wc"]) + params["bc"]
    return jax.nn.softmax(logits, axis=-1), value


if __name__ == "__main__":
    key = jax.random.PRNGKey(0)
    kx, kp = jax.random.split(key)

    batch = 8
    state_size = 32
    action_size = 8

    x = jax.random.normal(kx, (batch, state_size), jnp.float32)
    params = init_params(kp, state_size, action_size)

    forward = jax.jit(functools.partial(actor_critic_forward,
                                        action_size=action_size))
    probs, value = forward(x, params)
    jax.block_until_ready((probs, value))

    ref_probs, ref_value = reference_forward(x, params)

    assert probs.shape == (batch, action_size) and value.shape == (batch, 1)
    # bf16 matmuls + approx-reciprocal softmax denominator -> modest tolerance.
    assert jnp.allclose(probs, ref_probs, atol=2e-3, rtol=2e-3)
    assert jnp.allclose(value, ref_value, atol=2e-3, rtol=2e-3)
    assert jnp.allclose(jnp.sum(probs, axis=-1), 1.0, atol=5e-3)

    print("KERNEL_OK")
</pallas_src>

<mosaic_0001>
module attributes {stable_mosaic.version = 11 : i64} {
  func.func @actor_critic_kernel(%arg0: i32, %arg1: memref<8x32xf32, #tpu.memory_space<vmem>>, %arg2: memref<32x512xbf16, #tpu.memory_space<vmem>>, %arg3: memref<512x256xbf16, #tpu.memory_space<vmem>>, %arg4: memref<256x128xbf16, #tpu.memory_space<vmem>>, %arg5: memref<128x128xbf16, #tpu.memory_space<vmem>>, %arg6: memref<1x1024xf32, #tpu.memory_space<vmem>>, %arg7: memref<8x128xf32, #tpu.memory_space<vmem>>) attributes {dimension_semantics = [#tpu.dimension_semantics<parallel>], iteration_bounds = array<i64: 1>, scalar_prefetch = 0 : i64, scratch_operands = 0 : i64, tpu.core_type = #tpu.core_type<tc>, window_params = [{transform_indices = @transform_0, window_bounds = array<i64: 8, 32>}, {pipeline_mode = #tpu.pipeline_mode<synchronous>, transform_indices = @transform_1, window_bounds = array<i64: 32, 512>}, {pipeline_mode = #tpu.pipeline_mode<synchronous>, transform_indices = @transform_2, window_bounds = array<i64: 512, 256>}, {pipeline_mode = #tpu.pipeline_mode<synchronous>, transform_indices = @transform_3, window_bounds = array<i64: 256, 128>}, {pipeline_mode = #tpu.pipeline_mode<synchronous>, transform_indices = @transform_4, window_bounds = array<i64: 128, 128>}, {pipeline_mode = #tpu.pipeline_mode<synchronous>, transform_indices = @transform_5, window_bounds = array<i64: 1, 1024>}, {transform_indices = @transform_6, window_bounds = array<i64: 8, 128>}]} {
    %c0 = arith.constant 0 : index
    %c0_0 = arith.constant 0 : index
    %0 = vector.load %arg6[%c0, %c0_0] : memref<1x1024xf32, #tpu.memory_space<vmem>>, vector<1x512xf32>
    %c0_1 = arith.constant 0 : index
    %c512 = arith.constant 512 : index
    %1 = vector.load %arg6[%c0_1, %c512] : memref<1x1024xf32, #tpu.memory_space<vmem>>, vector<1x256xf32>
    %c0_2 = arith.constant 0 : index
    %c768 = arith.constant 768 : index
    %2 = vector.load %arg6[%c0_2, %c768] : memref<1x1024xf32, #tpu.memory_space<vmem>>, vector<1x128xf32>
    %c0_3 = arith.constant 0 : index
    %c896 = arith.constant 896 : index
    %3 = vector.load %arg6[%c0_3, %c896] : memref<1x1024xf32, #tpu.memory_space<vmem>>, vector<1x128xf32>
    %c0_4 = arith.constant 0 : index
    %c0_5 = arith.constant 0 : index
    %4 = vector.load %arg1[%c0_4, %c0_5] : memref<8x32xf32, #tpu.memory_space<vmem>>, vector<8x32xf32>
    %5 = arith.truncf %4 : vector<8x32xf32> to vector<8x32xbf16>
    %c0_6 = arith.constant 0 : index
    %c0_7 = arith.constant 0 : index
    %6 = vector.load %arg2[%c0_6, %c0_7] : memref<32x512xbf16, #tpu.memory_space<vmem>>, vector<32x512xbf16>
    %cst = arith.constant dense<0.000000e+00> : vector<8x512xf32>
    %7 = tpu.matmul %5, %6, %cst {dimension_numbers = #tpu.dot_dimension_numbers<[1], [0], [0], [1], [0, 0, 1, 1], [], []>} : vector<8x32xbf16>, vector<32x512xbf16>, vector<8x512xf32> -> vector<8x512xf32>
    %8 = vector.broadcast %0 : vector<1x512xf32> to vector<8x512xf32>
    %9 = arith.addf %7, %8 : vector<8x512xf32>
    %cst_8 = arith.constant 0.000000e+00 : f32
    %10 = vector.broadcast %cst_8 : f32 to vector<8x512xf32>
    %11 = arith.maximumf %9, %10 : vector<8x512xf32>
    %12 = arith.truncf %11 : vector<8x512xf32> to vector<8x512xbf16>
    %c0_9 = arith.constant 0 : index
    %c0_10 = arith.constant 0 : index
    %13 = vector.load %arg3[%c0_9, %c0_10] : memref<512x256xbf16, #tpu.memory_space<vmem>>, vector<512x256xbf16>
    %cst_11 = arith.constant dense<0.000000e+00> : vector<8x256xf32>
    %14 = tpu.matmul %12, %13, %cst_11 {dimension_numbers = #tpu.dot_dimension_numbers<[1], [0], [0], [1], [0, 0, 1, 1], [], []>} : vector<8x512xbf16>, vector<512x256xbf16>, vector<8x256xf32> -> vector<8x256xf32>
    %15 = vector.broadcast %1 : vector<1x256xf32> to vector<8x256xf32>
    %16 = arith.addf %14, %15 : vector<8x256xf32>
    %cst_12 = arith.constant 0.000000e+00 : f32
    %17 = vector.broadcast %cst_12 : f32 to vector<8x256xf32>
    %18 = arith.maximumf %16, %17 : vector<8x256xf32>
    %19 = arith.truncf %18 : vector<8x256xf32> to vector<8x256xbf16>
    %c0_13 = arith.constant 0 : index
    %c0_14 = arith.constant 0 : index
    %20 = vector.load %arg4[%c0_13, %c0_14] : memref<256x128xbf16, #tpu.memory_space<vmem>>, vector<256x128xbf16>
    %cst_15 = arith.constant dense<0.000000e+00> : vector<8x128xf32>
    %21 = tpu.matmul %19, %20, %cst_15 {dimension_numbers = #tpu.dot_dimension_numbers<[1], [0], [0], [1], [0, 0, 1, 1], [], []>} : vector<8x256xbf16>, vector<256x128xbf16>, vector<8x128xf32> -> vector<8x128xf32>
    %22 = vector.broadcast %2 : vector<1x128xf32> to vector<8x128xf32>
    %23 = arith.addf %21, %22 : vector<8x128xf32>
    %cst_16 = arith.constant 0.000000e+00 : f32
    %24 = vector.broadcast %cst_16 : f32 to vector<8x128xf32>
    %25 = arith.maximumf %23, %24 : vector<8x128xf32>
    %26 = arith.truncf %25 : vector<8x128xf32> to vector<8x128xbf16>
    %c0_17 = arith.constant 0 : index
    %c0_18 = arith.constant 0 : index
    %27 = vector.load %arg5[%c0_17, %c0_18] : memref<128x128xbf16, #tpu.memory_space<vmem>>, vector<128x128xbf16>
    %cst_19 = arith.constant dense<0.000000e+00> : vector<8x128xf32>
    %28 = tpu.matmul %26, %27, %cst_19 {dimension_numbers = #tpu.dot_dimension_numbers<[1], [0], [0], [1], [0, 0, 1, 1], [], []>} : vector<8x128xbf16>, vector<128x128xbf16>, vector<8x128xf32> -> vector<8x128xf32>
    %29 = vector.broadcast %3 : vector<1x128xf32> to vector<8x128xf32>
    %30 = arith.addf %28, %29 : vector<8x128xf32>
    %31 = tpu.iota {dimensions = array<i32: 1>} : vector<1x128xi32>
    %c8_i32 = arith.constant 8 : i32
    %32 = vector.broadcast %c8_i32 : i32 to vector<1x128xi32>
    %33 = arith.cmpi slt, %31, %32 : vector<1x128xi32>
    %cst_20 = arith.constant 0xFF800000 : f32
    %34 = vector.shape_cast %33 : vector<1x128xi1> to vector<1x128xi1>
    %35 = vector.broadcast %34 : vector<1x128xi1> to vector<8x128xi1>
    %36 = vector.broadcast %cst_20 : f32 to vector<8x128xf32>
    %37 = arith.select %35, %30, %36 : vector<8x128xi1>, vector<8x128xf32>
    %cst_21 = arith.constant dense<0xFF800000> : vector<8xf32>
    %38 = vector.multi_reduction <maximumf>, %37, %cst_21 [1] : vector<8x128xf32> to vector<8xf32>
    %39 = vector.shape_cast %38 : vector<8xf32> to vector<8x1xf32>
    %40 = vector.broadcast %39 : vector<8x1xf32> to vector<8x128xf32>
    %41 = arith.subf %37, %40 : vector<8x128xf32>
    %42 = math.exp %41 : vector<8x128xf32>
    %cst_22 = arith.constant dense<0.000000e+00> : vector<8xf32>
    %43 = vector.multi_reduction <add>, %42, %cst_22 [1] : vector<8x128xf32> to vector<8xf32>
    %44 = vector.shape_cast %43 : vector<8xf32> to vector<8x1xf32>
    %45 = tpu.reciprocal %44 {approx = true} : vector<8x1xf32> -> vector<8x1xf32>
    %46 = vector.broadcast %45 : vector<8x1xf32> to vector<8x128xf32>
    %47 = arith.mulf %42, %46 : vector<8x128xf32>
    %c8_i32_23 = arith.constant 8 : i32
    %48 = vector.broadcast %c8_i32_23 : i32 to vector<1x128xi32>
    %49 = arith.cmpi eq, %31, %48 : vector<1x128xi32>
    %50 = vector.shape_cast %49 : vector<1x128xi1> to vector<1x128xi1>
    %51 = vector.broadcast %50 : vector<1x128xi1> to vector<8x128xi1>
    %52 = arith.select %51, %30, %47 : vector<8x128xi1>, vector<8x128xf32>
    %c0_24 = arith.constant 0 : index
    %c0_25 = arith.constant 0 : index
    %53 = vector.load %arg7[%c0_24, %c0_25] : memref<8x128xf32, #tpu.memory_space<vmem>>, vector<8x128xf32>
    tpu.vector_store %arg7[%c0_24, %c0_25], %52 {strides = array<i32>} : memref<8x128xf32, #tpu.memory_space<vmem>>, vector<8x128xf32>,
    return
  }
  func.func @transform_0(%arg0: i32) -> (i32, i32) {
    %c0_i32 = arith.constant 0 : i32
    %c0_i32_0 = arith.constant 0 : i32
    return %arg0, %c0_i32 : i32, i32
  }
  func.func @transform_1(%arg0: i32) -> (i32, i32) {
    %c0_i32 = arith.constant 0 : i32
    %c0_i32_0 = arith.constant 0 : i32
    %c0_i32_1 = arith.constant 0 : i32
    return %c0_i32, %c0_i32_0 : i32, i32
  }
  func.func @transform_2(%arg0: i32) -> (i32, i32) {
    %c0_i32 = arith.constant 0 : i32
    %c0_i32_0 = arith.constant 0 : i32
    %c0_i32_1 = arith.constant 0 : i32
    return %c0_i32, %c0_i32_0 : i32, i32
  }
  func.func @transform_3(%arg0: i32) -> (i32, i32) {
    %c0_i32 = arith.constant 0 : i32
    %c0_i32_0 = arith.constant 0 : i32
    %c0_i32_1 = arith.constant 0 : i32
    return %c0_i32, %c0_i32_0 : i32, i32
  }
  func.func @transform_4(%arg0: i32) -> (i32, i32) {
    %c0_i32 = arith.constant 0 : i32
    %c0_i32_0 = arith.constant 0 : i32
    %c0_i32_1 = arith.constant 0 : i32
    return %c0_i32, %c0_i32_0 : i32, i32
  }
  func.func @transform_5(%arg0: i32) -> (i32, i32) {
    %c0_i32 = arith.constant 0 : i32
    %c0_i32_0 = arith.constant 0 : i32
    %c0_i32_1 = arith.constant 0 : i32
    return %c0_i32, %c0_i32_0 : i32, i32
  }
  func.func @transform_6(%arg0: i32) -> (i32, i32) {
    %c0_i32 = arith.constant 0 : i32
    %c0_i32_0 = arith.constant 0 : i32
    return %arg0, %c0_i32 : i32, i32
  }
}

</mosaic_0001>

<llo_original>
// kernel: actor_critic_forward.1
$region0: #{actor_critic_forward.1}
  #allocation0 [shape = 'u32[]', space=smem, size = 0x4, offset = 0x4, fixed_abs, tag = 'smem constant byte address 0x4 - core index']
  #allocation1 [shape = 'u32[144,128]{1,0:T(1,128)}', space=vmem, size = 0x12000, scoped, tag = 'internal scratch']
  %s0 = inlined_call_operand.vmem [shape: f32[8,32], index: 0, kind: input, shape index: {}]
  %s1 = inlined_call_operand.vmem [shape: bf16[32,512], index: 1, kind: input, shape index: {}]
  %s2 = inlined_call_operand.vmem [shape: bf16[512,256], index: 2, kind: input, shape index: {}]
  %s3 = inlined_call_operand.vmem [shape: bf16[256,128], index: 3, kind: input, shape index: {}]
  %s4 = inlined_call_operand.vmem [shape: bf16[128,128], index: 4, kind: input, shape index: {}]
  %s5 = inlined_call_operand.vmem [shape: f32[1,1024], index: 5, kind: input, shape index: {}]
  %s6 = inlined_call_operand.vmem [shape: f32[8,128], index: 6, kind: output, shape index: {}]
  %s7 = sld [smem:[#allocation0]]
  $region34: #{actor_critic_forward.1} parent=0
    _
  %s9 = ssub.s32 1, %s7
  %s10 = scalar_select 0, %s9, %s7
  // Predicated region
  $region2: #{actor_critic_forward.1} parent=0 // pred_check
    _
  $region3: #{actor_critic_forward.1} parent=0 // pred_check_branch
    %12 = sbr.rel (0) target = $region5
  $region4: #{actor_critic_forward.1} parent=0 // pred_region
    _
  $region5: #{actor_critic_forward.1} parent=0 // pred_fallthru
    _
  // Predicated region
  $region6: #{actor_critic_forward.1} parent=0 // pred_check
    _
  $region7: #{actor_critic_forward.1} parent=0 // pred_check_branch
    %14 = sbr.rel (0) target = $region9
  $region8: #{actor_critic_forward.1} parent=0 // pred_region
    _
  $region9: #{actor_critic_forward.1} parent=0 // pred_fallthru
    _
  // Predicated region
  $region10: #{actor_critic_forward.1} parent=0 // pred_check
    _
  $region11: #{actor_critic_forward.1} parent=0 // pred_check_branch
    %16 = sbr.rel (0) target = $region13
  $region12: #{actor_critic_forward.1} parent=0 // pred_region
    _
  $region13: #{actor_critic_forward.1} parent=0 // pred_fallthru
    _
  // Predicated region
  $region14: #{actor_critic_forward.1} parent=0 // pred_check
    _
  $region15: #{actor_critic_forward.1} parent=0 // pred_check_branch
    %18 = sbr.rel (0) target = $region17
  $region16: #{actor_critic_forward.1} parent=0 // pred_region
    _
  $region17: #{actor_critic_forward.1} parent=0 // pred_fallthru
    _
  // Predicated region
  $region18: #{actor_critic_forward.1} parent=0 // pred_check
    _
  $region19: #{actor_critic_forward.1} parent=0 // pred_check_branch
    %20 = sbr.rel (0) target = $region21
  $region20: #{actor_critic_forward.1} parent=0 // pred_region
    _
  $region21: #{actor_critic_forward.1} parent=0 // pred_fallthru
    _
  // Predicated region
  $region22: #{actor_critic_forward.1} parent=0 // pred_check
    _
  $region23: #{actor_critic_forward.1} parent=0 // pred_check_branch
    %22 = sbr.rel (0) target = $region25
  $region24: #{actor_critic_forward.1} parent=0 // pred_region
    _
  $region25: #{actor_critic_forward.1} parent=0 // pred_fallthru
    _
  %v24 = vld [vmem:[%s5] sm:$0xf]
  %v25 = vld [vmem:[%s5 + $0x4] sm:$0x3]
  %v26 = vld [vmem:[%s5 + $0x6] sm:$0x1]
  %v27 = vld [vmem:[%s5 + $0x7] sm:$0x1]
  %v28 = vld [vmem:[%s0] sm:$0xff]
  %v29 = vpack.c.bf16 %v28, %v28
  %v30 = vld [vmem:[%s1] sm:$0xff]
  %v31 = vld [vmem:[%s1 + $0x8] sm:$0xff]
  %v32 = vld [vmem:[%s1 + $0x10] sm:$0xff]
  %v33 = vld [vmem:[%s1 + $0x18] sm:$0xff]
  %v34 = vld [vmem:[%s1 + $0x20] sm:$0xff]
  %v35 = vld [vmem:[%s1 + $0x28] sm:$0xff]
  %v36 = vld [vmem:[%s1 + $0x30] sm:$0xff]
  %v37 = vld [vmem:[%s1 + $0x38] sm:$0xff]
  %v39 = vlaneseq
  %v40 = vshrl.u32 %v39, 7
  %v41 = vsub.s32 0, %v40
  %v42 = vrot.slane %v24, %v41
  %v43 = vlaneseq
  %v44 = vshrl.u32 %v43, 7
  %v45 = vsub.s32 1, %v44
  %v46 = vrot.slane %v24, %v45
  %v47 = vlaneseq
  %v48 = vshrl.u32 %v47, 7
  %v49 = vsub.s32 2, %v48
  %v50 = vrot.slane %v24, %v49
  %v51 = vlaneseq
  %v52 = vshrl.u32 %v51, 7
  %v53 = vsub.s32 3, %v52
  %v54 = vrot.slane %v24, %v53
  %v67 = vunpack.c.l.b16 %v30
  %v68 = vunpack.c.h.b16 %v30
  %v69 = vunpack.c.l.b16 %v31
  %v70 = vunpack.c.h.b16 %v31
  %v71 = vunpack.c.l.b16 %v32
  %v72 = vunpack.c.h.b16 %v32
  %v73 = vunpack.c.l.b16 %v33
  %v74 = vunpack.c.h.b16 %v33
  %v75 = vunpack.c.l.b16 %v34
  %v76 = vunpack.c.h.b16 %v34
  %v77 = vunpack.c.l.b16 %v35
  %v78 = vunpack.c.h.b16 %v35
  %v79 = vunpack.c.l.b16 %v36
  %v80 = vunpack.c.h.b16 %v36
  %v81 = vunpack.c.l.b16 %v37
  %v82 = vunpack.c.h.b16 %v37
  %v83 = vpack.c.b16 %v71, %v67
  %v84 = vpack.c.b16 %v72, %v68
  %v85 = vpack.c.b16 %v73, %v69
  %v86 = vpack.c.b16 %v74, %v70
  %v87 = vpack.c.b16 %v79, %v75
  %v88 = vpack.c.b16 %v80, %v76
  %v89 = vpack.c.b16 %v81, %v77
  %v90 = vpack.c.b16 %v82, %v78
  %vm99 = vcmask 261120
  %v101 = vsel %vm99, %v29, 0
  %103 = vmatprep.subr.bf16.mxu0 0
  %104 = vmatpush1.bf16.msra.mxu0 0
  %105 = vmatprep.subr.bf16.mxu0 0
  %106 = vmatpush1.bf16.msra.mxu0 0
  %107 = vmatprep.subr.bf16.mxu0 0
  %108 = vmatpush1.bf16.msra.mxu0 0
  %109 = vmatprep.subr.bf16.mxu0 0
  %110 = vmatpush1.bf16.msra.mxu0 0
  %111 = vmatprep.subr.bf16.mxu0 0
  %112 = vmatpush1.bf16.msra.mxu0 0
  %113 = vmatprep.subr.bf16.mxu0 0
  %114 = vmatpush1.bf16.msra.mxu0 0
  %115 = vmatprep.subr.bf16.mxu0 %v88
  %116 = vmatpush1.bf16.msra.mxu0 %v87
  %117 = vmatprep.subr.bf16.mxu0 %v84
  %118 = vmatpush1.bf16.msra.mxu0 %v83
  %119 = vmatprep.subr.bf16.mxu0 0
  %120 = vmatpush2.bf16.msra.mxu0 0
  %121 = vmatprep.subr.bf16.mxu0 0
  %122 = vmatpush2.bf16.msra.mxu0 0
  %123 = vmatprep.subr.bf16.mxu0 0
  %124 = vmatpush2.bf16.msra.mxu0 0
  %125 = vmatprep.subr.bf16.mxu0 0
  %126 = vmatpush2.bf16.msra.mxu0 0
  %127 = vmatprep.subr.bf16.mxu0 0
  %128 = vmatpush2.bf16.msra.mxu0 0
  %129 = vmatprep.subr.bf16.mxu0 0
  %130 = vmatpush2.bf16.msra.mxu0 0
  %131 = vmatprep.subr.bf16.mxu0 0
  %132 = vmatpush2.bf16.msra.mxu0 0
  %133 = vmatprep.subr.bf16.mxu0 0
  %134 = vmatpush2.bf16.msra.mxu0 0
  %135 = vmatprep.mubr.bf16.mxu0 0
  %136 = vmatmul.mubr.bf16.gmra.mxu0 %v101
  %v137 = vpop.f32.mrf.mxu0
  %v138 = vadd.f32 %v42, %v137
  %v139 = vpop.f32.mrf.mxu0
  %v140 = vadd.f32 %v46, %v139
  %v141 = vpop.f32.mrf.mxu0
  %v142 = vpop.f32.mrf.mxu0
  %143 = vdwg.mxu0
  %144 = vmatprep.subr.bf16.mxu0 0
  %145 = vmatpush1.bf16.msra.mxu0 0
  %146 = vmatprep.subr.bf16.mxu0 0
  %147 = vmatpush1.bf16.msra.mxu0 0
  %148 = vmatprep.subr.bf16.mxu0 0
  %149 = vmatpush1.bf16.msra.mxu0 0
  %150 = vmatprep.subr.bf16.mxu0 0
  %151 = vmatpush1.bf16.msra.mxu0 0
  %152 = vmatprep.subr.bf16.mxu0 0
  %153 = vmatpush1.bf16.msra.mxu0 0
  %154 = vmatprep.subr.bf16.mxu0 0
  %155 = vmatpush1.bf16.msra.mxu0 0
  %156 = vmatprep.subr.bf16.mxu0 %v90
  %157 = vmatpush1.bf16.msra.mxu0 %v89
  %158 = vmatprep.subr.bf16.mxu0 %v86
  %159 = vmatpush1.bf16.msra.mxu0 %v85
  %160 = vmatprep.subr.bf16.mxu0 0
  %161 = vmatpush2.bf16.msra.mxu0 0
  %162 = vmatprep.subr.bf16.mxu0 0
  %163 = vmatpush2.bf16.msra.mxu0 0
  %164 = vmatprep.subr.bf16.mxu0 0
  %165 = vmatpush2.bf16.msra.mxu0 0
  %166 = vmatprep.subr.bf16.mxu0 0
  %167 = vmatpush2.bf16.msra.mxu0 0
  %168 = vmatprep.subr.bf16.mxu0 0
  %169 = vmatpush2.bf16.msra.mxu0 0
  %170 = vmatprep.subr.bf16.mxu0 0
  %171 = vmatpush2.bf16.msra.mxu0 0
  %172 = vmatprep.subr.bf16.mxu0 0
  %173 = vmatpush2.bf16.msra.mxu0 0
  %174 = vmatprep.subr.bf16.mxu0 0
  %175 = vmatpush2.bf16.msra.mxu0 0
  %176 = vmatprep.mubr.bf16.mxu0 0
  %177 = vmatmul.mubr.bf16.gmra.mxu0 %v101
  %v178 = vpop.f32.mrf.mxu0
  %v179 = vadd.f32 %v50, %v178
  %v180 = vpop.f32.mrf.mxu0
  %v181 = vadd.f32 %v54, %v180
  %v182 = vpop.f32.mrf.mxu0
  %v183 = vpop.f32.mrf.mxu0
  %184 = vdwg.mxu0
  %v185 = vmax.f32 %v138, 0.0
  %v186 = vmax.f32 %v140, 0.0
  %v187 = vmax.f32 %v179, 0.0
  %v188 = vmax.f32 %v181, 0.0
  %v189 = vpack.c.bf16 %v185, %v185
  %v190 = vpack.c.bf16 %v186, %v186
  %v191 = vpack.c.bf16 %v187, %v187
  %v192 = vpack.c.bf16 %v188, %v188
  %v193 = vld [vmem:[%s2] sm:$0xff]
  %v194 = vld [vmem:[%s2 + $0x8] sm:$0xff]
  %v195 = vld [vmem:[%s2 + $0x10] sm:$0xff]
  %v196 = vld [vmem:[%s2 + $0x18] sm:$0xff]
  %v197 = vld [vmem:[%s2 + $0x20] sm:$0xff]
  %v198 = vld [vmem:[%s2 + $0x28] sm:$0xff]
  %v199 = vld [vmem:[%s2 + $0x30] sm:$0xff]
  %v200 = vld [vmem:[%s2 + $0x38] sm:$0xff]
  %v201 = vld [vmem:[%s2 + $0x40] sm:$0xff]
  %v202 = vld [vmem:[%s2 + $0x48] sm:$0xff]
  %v203 = vld [vmem:[%s2 + $0x50] sm:$0xff]
  %v204 = vld [vmem:[%s2 + $0x58] sm:$0xff]
  %v205 = vld [vmem:[%s2 + $0x60] sm:$0xff]
  %v206 = vld [vmem:[%s2 + $0x68] sm:$0xff]
  %v207 = vld [vmem:[%s2 + $0x70] sm:$0xff]
  %v208 = vld [vmem:[%s2 + $0x78] sm:$0xff]
  %v209 = vld [vmem:[%s2 + $0x80] sm:$0xff]
  %v210 = vld [vmem:[%s2 + $0x88] sm:$0xff]
  %v211 = vld [vmem:[%s2 + $0x90] sm:$0xff]
  %v212 = vld [vmem:[%s2 + $0x98] sm:$0xff]
  %v213 = vld [vmem:[%s2 + $0xa0] sm:$0xff]
  %v214 = vld [vmem:[%s2 + $0xa8] sm:$0xff]
  %v215 = vld [vmem:[%s2 + $0xb0] sm:$0xff]
  %v216 = vld [vmem:[%s2 + $0xb8] sm:$0xff]
  %v217 = vld [vmem:[%s2 + $0xc0] sm:$0xff]
  %v218 = vld [vmem:[%s2 + $0xc8] sm:$0xff]
  %v219 = vld [vmem:[%s2 + $0xd0] sm:$0xff]
  %v220 = vld [vmem:[%s2 + $0xd8] sm:$0xff]
  %v221 = vld [vmem:[%s2 + $0xe0] sm:$0xff]
  %v222 = vld [vmem:[%s2 + $0xe8] sm:$0xff]
  %v223 = vld [vmem:[%s2 + $0xf0] sm:$0xff]
  %v224 = vld [vmem:[%s2 + $0xf8] sm:$0xff]
  %v225 = vld [vmem:[%s2 + $0x100] sm:$0xff]
  %v226 = vld [vmem:[%s2 + $0x108] sm:$0xff]
  %v227 = vld [vmem:[%s2 + $0x110] sm:$0xff]
  %v228 = vld [vmem:[%s2 + $0x118] sm:$0xff]
  %v229 = vld [vmem:[%s2 + $0x120] sm:$0xff]
  %v230 = vld [vmem:[%s2 + $0x128] sm:$0xff]
  %v231 = vld [vmem:[%s2 + $0x130] sm:$0xff]
  %v232 = vld [vmem:[%s2 + $0x138] sm:$0xff]
  %v233 = vld [vmem:[%s2 + $0x140] sm:$0xff]
  %v234 = vld [vmem:[%s2 + $0x148] sm:$0xff]
  %v235 = vld [vmem:[%s2 + $0x150] sm:$0xff]
  %v236 = vld [vmem:[%s2 + $0x158] sm:$0xff]
  %v237 = vld [vmem:[%s2 + $0x160] sm:$0xff]
  %v238 = vld [vmem:[%s2 + $0x168] sm:$0xff]
  %v239 = vld [vmem:[%s2 + $0x170] sm:$0xff]
  %v240 = vld [vmem:[%s2 + $0x178] sm:$0xff]
  %v241 = vld [vmem:[%s2 + $0x180] sm:$0xff]
  %v242 = vld [vmem:[%s2 + $0x188] sm:$0xff]
  %v243 = vld [vmem:[%s2 + $0x190] sm:$0xff]
  %v244 = vld [vmem:[%s2 + $0x198] sm:$0xff]
  %v245 = vld [vmem:[%s2 + $0x1a0] sm:$0xff]
  %v246 = vld [vmem:[%s2 + $0x1a8] sm:$0xff]
  %v247 = vld [vmem:[%s2 + $0x1b0] sm:$0xff]
  %v248 = vld [vmem:[%s2 + $0x1b8] sm:$0xff]
  %v249 = vld [vmem:[%s2 + $0x1c0] sm:$0xff]
  %v250 = vld [vmem:[%s2 + $0x1c8] sm:$0xff]
  %v251 = vld [vmem:[%s2 + $0x1d0] sm:$0xff]
  %v252 = vld [vmem:[%s2 + $0x1d8] sm:$0xff]
  %v253 = vld [vmem:[%s2 + $0x1e0] sm:$0xff]
  %v254 = vld [vmem:[%s2 + $0x1e8] sm:$0xff]
  %v255 = vld [vmem:[%s2 + $0x1f0] sm:$0xff]
  %v256 = vld [vmem:[%s2 + $0x1f8] sm:$0xff]
  %v258 = vlaneseq
  %v259 = vshrl.u32 %v258, 7
  %v260 = vsub.s32 0, %v259
  %v261 = vrot.slane %v25, %v260
  %v262 = vlaneseq
  %v263 = vshrl.u32 %v262, 7
  %v264 = vsub.s32 1, %v263
  %v265 = vrot.slane %v25, %v264
  %v332 = vunpack.c.l.b16 %v193
  %v333 = vunpack.c.h.b16 %v193
  %v334 = vunpack.c.l.b16 %v194
  %v335 = vunpack.c.h.b16 %v194
  %v336 = vunpack.c.l.b16 %v195
  %v337 = vunpack.c.h.b16 %v195
  %v338 = vunpack.c.l.b16 %v196
  %v339 = vunpack.c.h.b16 %v196
  %v340 = vunpack.c.l.b16 %v197
  %v341 = vunpack.c.h.b16 %v197
  %v342 = vunpack.c.l.b16 %v198
  %v343 = vunpack.c.h.b16 %v198
  %v344 = vunpack.c.l.b16 %v199
  %v345 = vunpack.c.h.b16 %v199
  %v346 = vunpack.c.l.b16 %v200
  %v347 = vunpack.c.h.b16 %v200
  %v348 = vunpack.c.l.b16 %v201
  %v349 = vunpack.c.h.b16 %v201
  %v350 = vunpack.c.l.b16 %v202
  %v351 = vunpack.c.h.b16 %v202
  %v352 = vunpack.c.l.b16 %v203
  %v353 = vunpack.c.h.b16 %v203
  %v354 = vunpack.c.l.b16 %v204
  %v355 = vunpack.c.h.b16 %v204
  %v356 = vunpack.c.l.b16 %v205
  %v357 = vunpack.c.h.b16 %v205
  %v358 = vunpack.c.l.b16 %v206
  %v359 = vunpack.c.h.b16 %v206
  %v360 = vunpack.c.l.b16 %v207
  %v361 = vunpack.c.h.b16 %v207
  %v362 = vunpack.c.l.b16 %v208
  %v363 = vunpack.c.h.b16 %v208
  %v364 = vunpack.c.l.b16 %v209
  %v365 = vunpack.c.h.b16 %v209
  %v366 = vunpack.c.l.b16 %v210
  %v367 = vunpack.c.h.b16 %v210
  %v368 = vunpack.c.l.b16 %v211
  %v369 = vunpack.c.h.b16 %v211
  %v370 = vunpack.c.l.b16 %v212
  %v371 = vunpack.c.h.b16 %v212
  %v372 = vunpack.c.l.b16 %v213
  %v373 = vunpack.c.h.b16 %v213
  %v374 = vunpack.c.l.b16 %v214
  %v375 = vunpack.c.h.b16 %v214
  %v376 = vunpack.c.l.b16 %v215
  %v377 = vunpack.c.h.b16 %v215
  %v378 = vunpack.c.l.b16 %v216
  %v379 = vunpack.c.h.b16 %v216
  %v380 = vunpack.c.l.b16 %v217
  %v381 = vunpack.c.h.b16 %v217
  %v382 = vunpack.c.l.b16 %v218
  %v383 = vunpack.c.h.b16 %v218
  %v384 = vunpack.c.l.b16 %v219
  %v385 = vunpack.c.h.b16 %v219
  %v386 = vunpack.c.l.b16 %v220
  %v387 = vunpack.c.h.b16 %v220
  %v388 = vunpack.c.l.b16 %v221
  %v389 = vunpack.c.h.b16 %v221
  %v390 = vunpack.c.l.b16 %v222
  %v391 = vunpack.c.h.b16 %v222
  %v392 = vunpack.c.l.b16 %v223
  %v393 = vunpack.c.h.b16 %v223
  %v394 = vunpack.c.l.b16 %v224
  %v395 = vunpack.c.h.b16 %v224
  %v396 = vunpack.c.l.b16 %v225
  %v397 = vunpack.c.h.b16 %v225
  %v398 = vunpack.c.l.b16 %v226
  %v399 = vunpack.c.h.b16 %v226
  %v400 = vunpack.c.l.b16 %v227
  %v401 = vunpack.c.h.b16 %v227
  %v402 = vunpack.c.l.b16 %v228
  %v403 = vunpack.c.h.b16 %v228
  %v404 = vunpack.c.l.b16 %v229
  %v405 = vunpack.c.h.b16 %v229
  %v406 = vunpack.c.l.b16 %v230
  %v407 = vunpack.c.h.b16 %v230
  %v408 = vunpack.c.l.b16 %v231
  %v409 = vunpack.c.h.b16 %v231
  %v410 = vunpack.c.l.b16 %v232
  %v411 = vunpack.c.h.b16 %v232
  %v412 = vunpack.c.l.b16 %v233
  %v413 = vunpack.c.h.b16 %v233
  %v414 = vunpack.c.l.b16 %v234
  %v415 = vunpack.c.h.b16 %v234
  %v416 = vunpack.c.l.b16 %v235
  %v417 = vunpack.c.h.b16 %v235
  %v418 = vunpack.c.l.b16 %v236
  %v419 = vunpack.c.h.b16 %v236
  %v420 = vunpack.c.l.b16 %v237
  %v421 = vunpack.c.h.b16 %v237
  %v422 = vunpack.c.l.b16 %v238
  %v423 = vunpack.c.h.b16 %v238
  %v424 = vunpack.c.l.b16 %v239
  %v425 = vunpack.c.h.b16 %v239
  %v426 = vunpack.c.l.b16 %v240
  %v427 = vunpack.c.h.b16 %v240
  %v428 = vunpack.c.l.b16 %v241
  %v429 = vunpack.c.h.b16 %v241
  %v430 = vunpack.c.l.b16 %v242
  %v431 = vunpack.c.h.b16 %v242
  %v432 = vunpack.c.l.b16 %v243
  %v433 = vunpack.c.h.b16 %v243
  %v434 = vunpack.c.l.b16 %v244
  %v435 = vunpack.c.h.b16 %v244
  %v436 = vunpack.c.l.b16 %v245
  %v437 = vunpack.c.h.b16 %v245
  %v438 = vunpack.c.l.b16 %v246
  %v439 = vunpack.c.h.b16 %v246
  %v440 = vunpack.c.l.b16 %v247
  %v441 = vunpack.c.h.b16 %v247
  %v442 = vunpack.c.l.b16 %v248
  %v443 = vunpack.c.h.b16 %v248
  %v444 = vunpack.c.l.b16 %v249
  %v445 = vunpack.c.h.b16 %v249
  %v446 = vunpack.c.l.b16 %v250
  %v447 = vunpack.c.h.b16 %v250
  %v448 = vunpack.c.l.b16 %v251
  %v449 = vunpack.c.h.b16 %v251
  %v450 = vunpack.c.l.b16 %v252
  %v451 = vunpack.c.h.b16 %v252
  %v452 = vunpack.c.l.b16 %v253
  %v453 = vunpack.c.h.b16 %v253
  %v454 = vunpack.c.l.b16 %v254
  %v455 = vunpack.c.h.b16 %v254
  %v456 = vunpack.c.l.b16 %v255
  %v457 = vunpack.c.h.b16 %v255
  %v458 = vunpack.c.l.b16 %v256
  %v459 = vunpack.c.h.b16 %v256
  %v460 = vpack.c.b16 %v334, %v332
  %v461 = vpack.c.b16 %v335, %v333
  %v462 = vpack.c.b16 %v338, %v336
  %v463 = vpack.c.b16 %v339, %v337
  %v464 = vpack.c.b16 %v342, %v340
  %v465 = vpack.c.b16 %v343, %v341
  %v466 = vpack.c.b16 %v346, %v344
  %v467 = vpack.c.b16 %v347, %v345
  %v468 = vpack.c.b16 %v350, %v348
  %v469 = vpack.c.b16 %v351, %v349
  %v470 = vpack.c.b16 %v354, %v352
  %v471 = vpack.c.b16 %v355, %v353
  %v472 = vpack.c.b16 %v358, %v356
  %v473 = vpack.c.b16 %v359, %v357
  %v474 = vpack.c.b16 %v362, %v360
  %v475 = vpack.c.b16 %v363, %v361
  %v476 = vpack.c.b16 %v366, %v364
  %v477 = vpack.c.b16 %v367, %v365
  %v478 = vpack.c.b16 %v370, %v368
  %v479 = vpack.c.b16 %v371, %v369
  %v480 = vpack.c.b16 %v374, %v372
  %v481 = vpack.c.b16 %v375, %v373
  %v482 = vpack.c.b16 %v378, %v376
  %v483 = vpack.c.b16 %v379, %v377
  %v484 = vpack.c.b16 %v382, %v380
  %v485 = vpack.c.b16 %v383, %v381
  %v486 = vpack.c.b16 %v386, %v384
  %v487 = vpack.c.b16 %v387, %v385
  %v488 = vpack.c.b16 %v390, %v388
  %v489 = vpack.c.b16 %v391, %v389
  %v490 = vpack.c.b16 %v394, %v392
  %v491 = vpack.c.b16 %v395, %v393
  %v492 = vpack.c.b16 %v398, %v396
  %v493 = vpack.c.b16 %v399, %v397
  %v494 = vpack.c.b16 %v402, %v400
  %v495 = vpack.c.b16 %v403, %v401
  %v496 = vpack.c.b16 %v406, %v404
  %v497 = vpack.c.b16 %v407, %v405
  %v498 = vpack.c.b16 %v410, %v408
  %v499 = vpack.c.b16 %v411, %v409
  %v500 = vpack.c.b16 %v414, %v412
  %v501 = vpack.c.b16 %v415, %v413
  %v502 = vpack.c.b16 %v418, %v416
  %v503 = vpack.c.b16 %v419, %v417
  %v504 = vpack.c.b16 %v422, %v420
  %v505 = vpack.c.b16 %v423, %v421
  %v506 = vpack.c.b16 %v426, %v424
  %v507 = vpack.c.b16 %v427, %v425
  %v508 = vpack.c.b16 %v430, %v428
  %v509 = vpack.c.b16 %v431, %v429
  %v510 = vpack.c.b16 %v434, %v432
  %v511 = vpack.c.b16 %v435, %v433
  %v512 = vpack.c.b16 %v438, %v436
  %v513 = vpack.c.b16 %v439, %v437
  %v514 = vpack.c.b16 %v442, %v440
  %v515 = vpack.c.b16 %v443, %v441
  %v516 = vpack.c.b16 %v446, %v444
  %v517 = vpack.c.b16 %v447, %v445
  %v518 = vpack.c.b16 %v450, %v448
  %v519 = vpack.c.b16 %v451, %v449
  %v520 = vpack.c.b16 %v454, %v452
  %v521 = vpack.c.b16 %v455, %v453
  %v522 = vpack.c.b16 %v458, %v456
  %v523 = vpack.c.b16 %v459, %v457
  %588 = vmatprep.subr.bf16.mxu0 %v475
  %589 = vmatpush1.bf16.msra.mxu0 %v474
  %590 = vmatprep.subr.bf16.mxu0 %v473
  %591 = vmatpush1.bf16.msra.mxu0 %v472
  %592 = vmatprep.subr.bf16.mxu0 %v471
  %593 = vmatpush1.bf16.msra.mxu0 %v470
  %594 = vmatprep.subr.bf16.mxu0 %v469
  %595 = vmatpush1.bf16.msra.mxu0 %v468
  %596 = vmatprep.subr.bf16.mxu0 %v467
  %597 = vmatpush1.bf16.msra.mxu0 %v466
  %598 = vmatprep.subr.bf16.mxu0 %v465
  %599 = vmatpush1.bf16.msra.mxu0 %v464
  %600 = vmatprep.subr.bf16.mxu0 %v463
  %601 = vmatpush1.bf16.msra.mxu0 %v462
  %602 = vmatprep.subr.bf16.mxu0 %v461
  %603 = vmatpush1.bf16.msra.mxu0 %v460
  %604 = vmatprep.subr.bf16.mxu0 %v491
  %605 = vmatpush2.bf16.msra.mxu0 %v490
  %606 = vmatprep.subr.bf16.mxu0 %v489
  %607 = vmatpush2.bf16.msra.mxu0 %v488
  %608 = vmatprep.subr.bf16.mxu0 %v487
  %609 = vmatpush2.bf16.msra.mxu0 %v486
  %610 = vmatprep.subr.bf16.mxu0 %v485
  %611 = vmatpush2.bf16.msra.mxu0 %v484
  %612 = vmatprep.subr.bf16.mxu0 %v483
  %613 = vmatpush2.bf16.msra.mxu0 %v482
  %614 = vmatprep.subr.bf16.mxu0 %v481
  %615 = vmatpush2.bf16.msra.mxu0 %v480
  %616 = vmatprep.subr.bf16.mxu0 %v479
  %617 = vmatpush2.bf16.msra.mxu0 %v478
  %618 = vmatprep.subr.bf16.mxu0 %v477
  %619 = vmatpush2.bf16.msra.mxu0 %v476
  %620 = vmatprep.mubr.bf16.mxu0 %v190
  %621 = vmatmul.mubr.bf16.gmra.mxu0 %v189
  %v622 = vpop.f32.mrf.mxu0
  %v623 = vadd.f32 %v261, %v622
  %v624 = vpop.f32.mrf.mxu0
  %v625 = vadd.f32 %v265, %v624
  %v626 = vpop.f32.mrf.mxu0
  %v627 = vpop.f32.mrf.mxu0
  %628 = vdwg.mxu0
  %629 = vmatprep.subr.bf16.mxu0 %v507
  %630 = vmatpush1.bf16.msra.mxu0 %v506
  %631 = vmatprep.subr.bf16.mxu0 %v505
  %632 = vmatpush1.bf16.msra.mxu0 %v504
  %633 = vmatprep.subr.bf16.mxu0 %v503
  %634 = vmatpush1.bf16.msra.mxu0 %v502
  %635 = vmatprep.subr.bf16.mxu0 %v501
  %636 = vmatpush1.bf16.msra.mxu0 %v500
  %637 = vmatprep.subr.bf16.mxu0 %v499
  %638 = vmatpush1.bf16.msra.mxu0 %v498
  %639 = vmatprep.subr.bf16.mxu0 %v497
  %640 = vmatpush1.bf16.msra.mxu0 %v496
  %641 = vmatprep.subr.bf16.mxu0 %v495
  %642 = vmatpush1.bf16.msra.mxu0 %v494
  %643 = vmatprep.subr.bf16.mxu0 %v493
  %644 = vmatpush1.bf16.msra.mxu0 %v492
  %645 = vmatprep.subr.bf16.mxu0 %v523
  %646 = vmatpush2.bf16.msra.mxu0 %v522
  %647 = vmatprep.subr.bf16.mxu0 %v521
  %648 = vmatpush2.bf16.msra.mxu0 %v520
  %649 = vmatprep.subr.bf16.mxu0 %v519
  %650 = vmatpush2.bf16.msra.mxu0 %v518
  %651 = vmatprep.subr.bf16.mxu0 %v517
  %652 = vmatpush2.bf16.msra.mxu0 %v516
  %653 = vmatprep.subr.bf16.mxu0 %v515
  %654 = vmatpush2.bf16.msra.mxu0 %v514
  %655 = vmatprep.subr.bf16.mxu0 %v513
  %656 = vmatpush2.bf16.msra.mxu0 %v512
  %657 = vmatprep.subr.bf16.mxu0 %v511
  %658 = vmatpush2.bf16.msra.mxu0 %v510
  %659 = vmatprep.subr.bf16.mxu0 %v509
  %660 = vmatpush2.bf16.msra.mxu0 %v508
  %661 = vmatprep.mubr.bf16.mxu0 %v192
  %662 = vmatmul.mubr.bf16.gmra.mxu0 %v191
  %v663 = vpop.f32.mrf.mxu0
  %v664 = vadd.f32 %v623, %v663
  %v665 = vpop.f32.mrf.mxu0
  %v666 = vadd.f32 %v625, %v665
  %v667 = vpop.f32.mrf.mxu0
  %v668 = vpop.f32.mrf.mxu0
  %669 = vdwg.mxu0
  %v670 = vmax.f32 %v664, 0.0
  %v671 = vmax.f32 %v666, 0.0
  %v672 = vpack.c.bf16 %v670, %v670
  %v673 = vpack.c.bf16 %v671, %v671
  %v674 = vld [vmem:[%s3] sm:$0xf]
  %v675 = vld [vmem:[%s3 + $0x4] sm:$0xf]
  %v676 = vld [vmem:[%s3 + $0x8] sm:$0xf]
  %v677 = vld [vmem:[%s3 + $0xc] sm:$0xf]
  %v678 = vld [vmem:[%s3 + $0x10] sm:$0xf]
  %v679 = vld [vmem:[%s3 + $0x14] sm:$0xf]
  %v680 = vld [vmem:[%s3 + $0x18] sm:$0xf]
  %v681 = vld [vmem:[%s3 + $0x1c] sm:$0xf]
  %v682 = vld [vmem:[%s3 + $0x20] sm:$0xf]
  %v683 = vld [vmem:[%s3 + $0x24] sm:$0xf]
  %v684 = vld [vmem:[%s3 + $0x28] sm:$0xf]
  %v685 = vld [vmem:[%s3 + $0x2c] sm:$0xf]
  %v686 = vld [vmem:[%s3 + $0x30] sm:$0xf]
  %v687 = vld [vmem:[%s3 + $0x34] sm:$0xf]
  %v688 = vld [vmem:[%s3 + $0x38] sm:$0xf]
  %v689 = vld [vmem:[%s3 + $0x3c] sm:$0xf]
  %v690 = vld [vmem:[%s3 + $0x40] sm:$0xf]
  %v691 = vld [vmem:[%s3 + $0x44] sm:$0xf]
  %v692 = vld [vmem:[%s3 + $0x48] sm:$0xf]
  %v693 = vld [vmem:[%s3 + $0x4c] sm:$0xf]
  %v694 = vld [vmem:[%s3 + $0x50] sm:$0xf]
  %v695 = vld [vmem:[%s3 + $0x54] sm:$0xf]
  %v696 = vld [vmem:[%s3 + $0x58] sm:$0xf]
  %v697 = vld [vmem:[%s3 + $0x5c] sm:$0xf]
  %v698 = vld [vmem:[%s3 + $0x60] sm:$0xf]
  %v699 = vld [vmem:[%s3 + $0x64] sm:$0xf]
  %v700 = vld [vmem:[%s3 + $0x68] sm:$0xf]
  %v701 = vld [vmem:[%s3 + $0x6c] sm:$0xf]
  %v702 = vld [vmem:[%s3 + $0x70] sm:$0xf]
  %v703 = vld [vmem:[%s3 + $0x74] sm:$0xf]
  %v704 = vld [vmem:[%s3 + $0x78] sm:$0xf]
  %v705 = vld [vmem:[%s3 + $0x7c] sm:$0xf]
  %v707 = vlaneseq
  %v708 = vshrl.u32 %v707, 7
  %v709 = vsub.s32 0, %v708
  %v710 = vrot.slane %v26, %v709
  %v744 = vunpack.c.l.b16 %v674
  %v745 = vunpack.c.l.b16 %v675
  %v746 = vunpack.c.l.b16 %v676
  %v747 = vunpack.c.l.b16 %v677
  %v748 = vunpack.c.l.b16 %v678
  %v749 = vunpack.c.l.b16 %v679
  %v750 = vunpack.c.l.b16 %v680
  %v751 = vunpack.c.l.b16 %v681
  %v752 = vunpack.c.l.b16 %v682
  %v753 = vunpack.c.l.b16 %v683
  %v754 = vunpack.c.l.b16 %v684
  %v755 = vunpack.c.l.b16 %v685
  %v756 = vunpack.c.l.b16 %v686
  %v757 = vunpack.c.l.b16 %v687
  %v758 = vunpack.c.l.b16 %v688
  %v759 = vunpack.c.l.b16 %v689
  %v760 = vunpack.c.l.b16 %v690
  %v761 = vunpack.c.l.b16 %v691
  %v762 = vunpack.c.l.b16 %v692
  %v763 = vunpack.c.l.b16 %v693
  %v764 = vunpack.c.l.b16 %v694
  %v765 = vunpack.c.l.b16 %v695
  %v766 = vunpack.c.l.b16 %v696
  %v767 = vunpack.c.l.b16 %v697
  %v768 = vunpack.c.l.b16 %v698
  %v769 = vunpack.c.l.b16 %v699
  %v770 = vunpack.c.l.b16 %v700
  %v771 = vunpack.c.l.b16 %v701
  %v772 = vunpack.c.l.b16 %v702
  %v773 = vunpack.c.l.b16 %v703
  %v774 = vunpack.c.l.b16 %v704
  %v775 = vunpack.c.l.b16 %v705
  %v776 = vpack.c.b16 %v745, %v744
  %v777 = vpack.c.b16 %v747, %v746
  %v778 = vpack.c.b16 %v749, %v748
  %v779 = vpack.c.b16 %v751, %v750
  %v780 = vpack.c.b16 %v753, %v752
  %v781 = vpack.c.b16 %v755, %v754
  %v782 = vpack.c.b16 %v757, %v756
  %v783 = vpack.c.b16 %v759, %v758
  %v784 = vpack.c.b16 %v761, %v760
  %v785 = vpack.c.b16 %v763, %v762
  %v786 = vpack.c.b16 %v765, %v764
  %v787 = vpack.c.b16 %v767, %v766
  %v788 = vpack.c.b16 %v769, %v768
  %v789 = vpack.c.b16 %v771, %v770
  %v790 = vpack.c.b16 %v773, %v772
  %v791 = vpack.c.b16 %v775, %v774
  %808 = vmatprep.subr.bf16.mxu0 0
  %809 = vmatpush1.bf16.msra.mxu0 %v783
  %810 = vmatprep.subr.bf16.mxu0 0
  %811 = vmatpush1.bf16.msra.mxu0 %v782
  %812 = vmatprep.subr.bf16.mxu0 0
  %813 = vmatpush1.bf16.msra.mxu0 %v781
  %814 = vmatprep.subr.bf16.mxu0 0
  %815 = vmatpush1.bf16.msra.mxu0 %v780
  %816 = vmatprep.subr.bf16.mxu0 0
  %817 = vmatpush1.bf16.msra.mxu0 %v779
  %818 = vmatprep.subr.bf16.mxu0 0
  %819 = vmatpush1.bf16.msra.mxu0 %v778
  %820 = vmatprep.subr.bf16.mxu0 0
  %821 = vmatpush1.bf16.msra.mxu0 %v777
  %822 = vmatprep.subr.bf16.mxu0 0
  %823 = vmatpush1.bf16.msra.mxu0 %v776
  %824 = vmatprep.subr.bf16.mxu0 0
  %825 = vmatpush2.bf16.msra.mxu0 %v791
  %826 = vmatprep.subr.bf16.mxu0 0
  %827 = vmatpush2.bf16.msra.mxu0 %v790
  %828 = vmatprep.subr.bf16.mxu0 0
  %829 = vmatpush2.bf16.msra.mxu0 %v789
  %830 = vmatprep.subr.bf16.mxu0 0
  %831 = vmatpush2.bf16.msra.mxu0 %v788
  %832 = vmatprep.subr.bf16.mxu0 0
  %833 = vmatpush2.bf16.msra.mxu0 %v787
  %834 = vmatprep.subr.bf16.mxu0 0
  %835 = vmatpush2.bf16.msra.mxu0 %v786
  %836 = vmatprep.subr.bf16.mxu0 0
  %837 = vmatpush2.bf16.msra.mxu0 %v785
  %838 = vmatprep.subr.bf16.mxu0 0
  %839 = vmatpush2.bf16.msra.mxu0 %v784
  %840 = vmatprep.mubr.bf16.mxu0 %v673
  %841 = vmatmul.mubr.bf16.gmra.mxu0 %v672
  %v842 = vpop.f32.mrf.mxu0
  %v843 = vadd.f32 %v710, %v842
  %v844 = vpop.f32.mrf.mxu0
  %v845 = vpop.f32.mrf.mxu0
  %v846 = vpop.f32.mrf.mxu0
  %847 = vdwg.mxu0
  %v848 = vmax.f32 %v843, 0.0
  %v849 = vpack.c.bf16 %v848, %v848
  %v850 = vld [vmem:[%s4] sm:$0xf]
  %v851 = vld [vmem:[%s4 + $0x4] sm:$0xf]
  %v852 = vld [vmem:[%s4 + $0x8] sm:$0xf]
  %v853 = vld [vmem:[%s4 + $0xc] sm:$0xf]
  %v854 = vld [vmem:[%s4 + $0x10] sm:$0xf]
  %v855 = vld [vmem:[%s4 + $0x14] sm:$0xf]
  %v856 = vld [vmem:[%s4 + $0x18] sm:$0xf]
  %v857 = vld [vmem:[%s4 + $0x1c] sm:$0xf]
  %v858 = vld [vmem:[%s4 + $0x20] sm:$0xf]
  %v859 = vld [vmem:[%s4 + $0x24] sm:$0xf]
  %v860 = vld [vmem:[%s4 + $0x28] sm:$0xf]
  %v861 = vld [vmem:[%s4 + $0x2c] sm:$0xf]
  %v862 = vld [vmem:[%s4 + $0x30] sm:$0xf]
  %v863 = vld [vmem:[%s4 + $0x34] sm:$0xf]
  %v864 = vld [vmem:[%s4 + $0x38] sm:$0xf]
  %v865 = vld [vmem:[%s4 + $0x3c] sm:$0xf]
  %v867 = vlaneseq
  %v868 = vshrl.u32 %v867, 7
  %v869 = vsub.s32 0, %v868
  %v870 = vrot.slane %v27, %v869
  %v888 = vunpack.c.l.b16 %v850
  %v889 = vunpack.c.l.b16 %v851
  %v890 = vunpack.c.l.b16 %v852
  %v891 = vunpack.c.l.b16 %v853
  %v892 = vunpack.c.l.b16 %v854
  %v893 = vunpack.c.l.b16 %v855
  %v894 = vunpack.c.l.b16 %v856
  %v895 = vunpack.c.l.b16 %v857
  %v896 = vunpack.c.l.b16 %v858
  %v897 = vunpack.c.l.b16 %v859
  %v898 = vunpack.c.l.b16 %v860
  %v899 = vunpack.c.l.b16 %v861
  %v900 = vunpack.c.l.b16 %v862
  %v901 = vunpack.c.l.b16 %v863
  %v902 = vunpack.c.l.b16 %v864
  %v903 = vunpack.c.l.b16 %v865
  %v904 = vpack.c.b16 %v889, %v888
  %v905 = vpack.c.b16 %v891, %v890
  %v906 = vpack.c.b16 %v893, %v892
  %v907 = vpack.c.b16 %v895, %v894
  %v908 = vpack.c.b16 %v897, %v896
  %v909 = vpack.c.b16 %v899, %v898
  %v910 = vpack.c.b16 %v901, %v900
  %v911 = vpack.c.b16 %v903, %v902
  %920 = vmatprep.subr.bf16.mxu0 0
  %921 = vmatpush1.bf16.msra.mxu0 %v911
  %922 = vmatprep.subr.bf16.mxu0 0
  %923 = vmatpush1.bf16.msra.mxu0 %v910
  %924 = vmatprep.subr.bf16.mxu0 0
  %925 = vmatpush1.bf16.msra.mxu0 %v909
  %926 = vmatprep.subr.bf16.mxu0 0
  %927 = vmatpush1.bf16.msra.mxu0 %v908
  %928 = vmatprep.subr.bf16.mxu0 0
  %929 = vmatpush1.bf16.msra.mxu0 %v907
  %930 = vmatprep.subr.bf16.mxu0 0
  %931 = vmatpush1.bf16.msra.mxu0 %v906
  %932 = vmatprep.subr.bf16.mxu0 0
  %933 = vmatpush1.bf16.msra.mxu0 %v905
  %934 = vmatprep.subr.bf16.mxu0 0
  %935 = vmatpush1.bf16.msra.mxu0 %v904
  %936 = vmatprep.subr.bf16.mxu0 0
  %937 = vmatpush2.bf16.msra.mxu0 0
  %938 = vmatprep.subr.bf16.mxu0 0
  %939 = vmatpush2.bf16.msra.mxu0 0
  %940 = vmatprep.subr.bf16.mxu0 0
  %941 = vmatpush2.bf16.msra.mxu0 0
  %942 = vmatprep.subr.bf16.mxu0 0
  %943 = vmatpush2.bf16.msra.mxu0 0
  %944 = vmatprep.subr.bf16.mxu0 0
  %945 = vmatpush2.bf16.msra.mxu0 0
  %946 = vmatprep.subr.bf16.mxu0 0
  %947 = vmatpush2.bf16.msra.mxu0 0
  %948 = vmatprep.subr.bf16.mxu0 0
  %949 = vmatpush2.bf16.msra.mxu0 0
  %950 = vmatprep.subr.bf16.mxu0 0
  %951 = vmatpush2.bf16.msra.mxu0 0
  %952 = vmatprep.mubr.bf16.mxu0 0
  %953 = vmatmul.mubr.bf16.gmra.mxu0 %v849
  %v954 = vpop.f32.mrf.mxu0
  %v955 = vadd.f32 %v870, %v954
  %v956 = vpop.f32.mrf.mxu0
  %v957 = vpop.f32.mrf.mxu0
  %v958 = vpop.f32.mrf.mxu0
  %959 = vdwg.mxu0
  %v960 = vlaneseq
  %v961 = vand.u32 %v960, 127
  %vm962 = vcmp.lt.s32.totalorder %v961, 8
  %v963 = vsel %vm962, 1, 0
  %vm964 = vcmp.eq.s32.totalorder %v963, 1
  %v965 = vsel %vm964, %v955, -inf
  %966 = vmax.xlane.f32.xlu0 %v965
  %v967 = vpop.xlane.xlu0 %966
  %v968 = vsub.f32 %v965, %v967
  %v969 = vmul.f32 %v968, 1.442695
  %v970 = vpow.pop %v969
  %971 = vadd.xlane.f32.xlu0 %v970
  %v972 = vpop.xlane.xlu0 %971
  %v973 = vrcp.pop %v972
  %v974 = vmul.f32 %v970, %v973
  %vm975 = vcmp.eq.s32.totalorder %v961, 8
  %v976 = vsel %vm975, 1, 0
  %vm977 = vcmp.eq.s32.totalorder %v976, 1
  %v978 = vsel %vm977, %v955, %v974
  %979 = vst [vmem:[%s6] sm:$0xff] %v978
  // Predicated region
  $region26: #{actor_critic_forward.1} parent=0 // pred_check
    _
  $region27: #{actor_critic_forward.1} parent=0 // pred_check_branch
    %981 = sbr.rel (0) target = $region29
  $region28: #{actor_critic_forward.1} parent=0 // pred_region
    _
  $region29: #{actor_critic_forward.1} parent=0 // pred_fallthru
    _
  // Predicated region
  $region30: #{actor_critic_forward.1} parent=0 // pred_check
    _
  $region31: #{actor_critic_forward.1} parent=0 // pred_check_branch
    %983 = sbr.rel (0) target = $region33
  $region32: #{actor_critic_forward.1} parent=0 // pred_region
    _
  $region33: #{actor_critic_forward.1} parent=0 // pred_fallthru
    _

</llo_original>
